<compile_context>
chip_gen: v5e
topology: v5e:2x2
jax: 0.10.0
libtpu: 0.0.40
codegen_flags: <defaults>
</compile_context>

<pallas_src>
import functools

import jax
import jax.numpy as jnp
from jax.experimental import pallas as pl
from jax.experimental.pallas import tpu as pltpu

IN_FEATS = 7 * 7          # 49
HID_FEATS = 7 * 7         # 49
OUT_FEATS = 7 * 7 * 4     # 196

IN_PAD = 128              # 49  -> 128 (lane-dense K for fc1)
HID_PAD = 128             # 49  -> 128 (lane-dense N for fc1 / K for fc2)
OUT_PAD = 256             # 196 -> 256 (lane-dense N for fc2, unmasked stores)


def _round_up(n, m):
    return ((n + m - 1) // m) * m


def _mlp_kernel(x_ref, w1_ref, b1_ref, w2_ref, b2_ref, o_ref):
    # x_ref : (TB, 128)  bf16     w1_ref: (128, 128) bf16   b1_ref: (1, 128) f32
    # w2_ref: (128, 256) bf16     b2_ref: (1, 256)   f32    o_ref : (TB, 256) f32
    x = x_ref[...]
    # fc1 + ReLU: bf16 operands on the MXU, f32 accumulate, f32 bias/ReLU.
    h = jnp.dot(x, w1_ref[...], preferred_element_type=jnp.float32) + b1_ref[...]
    h = jnp.maximum(h, 0.0)
    # fc2: cast activations back to bf16 for the MXU, accumulate in f32.
    y = jnp.dot(h.astype(jnp.bfloat16), w2_ref[...],
                preferred_element_type=jnp.float32) + b2_ref[...]
    o_ref[...] = y.astype(o_ref.dtype)


def prepare_params(w1, b1, w2, b2):
    """One-time parameter prep: transpose to (in, out), zero-pad to lane-dense
    shapes, cast weights to bf16 (biases stay f32)."""
    w1_t = jnp.zeros((IN_PAD, HID_PAD), jnp.bfloat16)
    w1_t = w1_t.at[:IN_FEATS, :HID_FEATS].set(jnp.transpose(w1).astype(jnp.bfloat16))
    w2_t = jnp.zeros((HID_PAD, OUT_PAD), jnp.bfloat16)
    w2_t = w2_t.at[:HID_FEATS, :OUT_FEATS].set(jnp.transpose(w2).astype(jnp.bfloat16))
    b1_p = jnp.zeros((1, HID_PAD), jnp.float32).at[0, :HID_FEATS].set(
        b1.astype(jnp.float32))
    b2_p = jnp.zeros((1, OUT_PAD), jnp.float32).at[0, :OUT_FEATS].set(
        b2.astype(jnp.float32))
    return w1_t, b1_p, w2_t, b2_p


@functools.partial(jax.jit, static_argnames=("batch_tile",))
def mlp_forward(x_nchw, params, *, batch_tile=512):
    """x_nchw: (B, C, H, W) with C*H*W == 49. Returns (B, 196) float32."""
    w1_t, b1_p, w2_t, b2_p = params
    B = x_nchw.shape[0]
    x = x_nchw.reshape(B, -1)                       # torch.flatten(x, 1, -1)
    assert x.shape[1] == IN_FEATS

    # Batch tile: multiple of 8 (sublane), capped at `batch_tile` rows so
    # double-buffered x/out tiles stay well inside scoped VMEM on every gen
    # (v7x included). Pad B up to a multiple of the tile.
    tb = min(batch_tile, _round_up(B, 8))
    b_pad = _round_up(B, tb)

    # Zero-pad batch rows and feature columns; cast activations to bf16.
    x_p = jnp.zeros((b_pad, IN_PAD), jnp.bfloat16)
    x_p = x_p.at[:B, :IN_FEATS].set(x.astype(jnp.bfloat16))

    grid = (b_pad // tb,)
    out_p = pl.pallas_call(
        _mlp_kernel,
        out_shape=jax.ShapeDtypeStruct((b_pad, OUT_PAD), jnp.float32),
        grid=grid,
        in_specs=[
            pl.BlockSpec((tb, IN_PAD), lambda i: (i, 0)),        # x: per-step tile
            pl.BlockSpec((IN_PAD, HID_PAD), lambda i: (0, 0)),   # W1: resident
            pl.BlockSpec((1, HID_PAD), lambda i: (0, 0)),        # b1: resident
            pl.BlockSpec((HID_PAD, OUT_PAD), lambda i: (0, 0)),  # W2: resident
            pl.BlockSpec((1, OUT_PAD), lambda i: (0, 0)),        # b2: resident
        ],
        out_specs=pl.BlockSpec((tb, OUT_PAD), lambda i: (i, 0)),
        compiler_params=pltpu.CompilerParams(
            dimension_semantics=("parallel",)),
    )(x_p, w1_t, b1_p, w2_t, b2_p)

    # Slice the valid rows/columns back out (padding is exact zeros).
    return out_p[:B, :OUT_FEATS]


def init_params(key):
    """Deterministic init mimicking nn.Linear default (uniform +/- 1/sqrt(fan_in))."""
    k1, k2, k3, k4 = jax.random.split(key, 4)
    bound1 = 1.0 / jnp.sqrt(IN_FEATS)
    bound2 = 1.0 / jnp.sqrt(HID_FEATS)
    w1 = jax.random.uniform(k1, (HID_FEATS, IN_FEATS), jnp.float32, -bound1, bound1)
    b1 = jax.random.uniform(k2, (HID_FEATS,), jnp.float32, -bound1, bound1)
    w2 = jax.random.uniform(k3, (OUT_FEATS, HID_FEATS), jnp.float32, -bound2, bound2)
    b2 = jax.random.uniform(k4, (OUT_FEATS,), jnp.float32, -bound2, bound2)
    return w1, b1, w2, b2


if __name__ == "__main__":
    key = jax.random.PRNGKey(0)
    kx, kp = jax.random.split(key)

    # MNIST-like toy input: batch=2, 1 channel, 7x7 spatial -> flattens to 49 features.
    x = jax.random.normal(kx, (2, 1, 7, 7), jnp.float32)
    w1, b1, w2, b2 = init_params(kp)

    params = prepare_params(w1, b1, w2, b2)         # one-time prep, off the hot path
    out = mlp_forward(x, params)
    jax.block_until_ready(out)

    # Reference in plain JAX with the same bf16 operand precision as the kernel
    # (bf16 inputs/weights, f32 accumulate) so the comparison is tight.
    x_flat = x.reshape(x.shape[0], -1)
    xb = x_flat.astype(jnp.bfloat16).astype(jnp.float32)
    w1b = w1.astype(jnp.bfloat16).astype(jnp.float32)
    w2b = w2.astype(jnp.bfloat16).astype(jnp.float32)
    h_ref = jnp.maximum(xb @ w1b.T + b1, 0.0)
    ref = h_ref.astype(jnp.bfloat16).astype(jnp.float32) @ w2b.T + b2

    assert out.shape == (2, OUT_FEATS)
    assert jnp.allclose(out, ref, atol=2e-3, rtol=2e-3)

    print("KERNEL_OK")
</pallas_src>

<mosaic_0001>
module attributes {stable_mosaic.version = 11 : i64} {
  func.func @_mlp_kernel(%arg0: i32, %arg1: memref<8x128xbf16, #tpu.memory_space<vmem>>, %arg2: memref<128x128xbf16, #tpu.memory_space<vmem>>, %arg3: memref<1x128xf32, #tpu.memory_space<vmem>>, %arg4: memref<128x256xbf16, #tpu.memory_space<vmem>>, %arg5: memref<1x256xf32, #tpu.memory_space<vmem>>, %arg6: memref<8x256xf32, #tpu.memory_space<vmem>>) attributes {dimension_semantics = [#tpu.dimension_semantics<parallel>], iteration_bounds = array<i64: 1>, scalar_prefetch = 0 : i64, scratch_operands = 0 : i64, tpu.core_type = #tpu.core_type<tc>, window_params = [{transform_indices = @transform_0, window_bounds = array<i64: 8, 128>}, {pipeline_mode = #tpu.pipeline_mode<synchronous>, transform_indices = @transform_1, window_bounds = array<i64: 128, 128>}, {pipeline_mode = #tpu.pipeline_mode<synchronous>, transform_indices = @transform_2, window_bounds = array<i64: 1, 128>}, {pipeline_mode = #tpu.pipeline_mode<synchronous>, transform_indices = @transform_3, window_bounds = array<i64: 128, 256>}, {pipeline_mode = #tpu.pipeline_mode<synchronous>, transform_indices = @transform_4, window_bounds = array<i64: 1, 256>}, {transform_indices = @transform_5, window_bounds = array<i64: 8, 256>}]} {
    %c0 = arith.constant 0 : index
    %c0_0 = arith.constant 0 : index
    %0 = vector.load %arg1[%c0, %c0_0] : memref<8x128xbf16, #tpu.memory_space<vmem>>, vector<8x128xbf16>
    %c0_1 = arith.constant 0 : index
    %c0_2 = arith.constant 0 : index
    %1 = vector.load %arg2[%c0_1, %c0_2] : memref<128x128xbf16, #tpu.memory_space<vmem>>, vector<128x128xbf16>
    %cst = arith.constant dense<0.000000e+00> : vector<8x128xf32>
    %2 = tpu.matmul %0, %1, %cst {dimension_numbers = #tpu.dot_dimension_numbers<[1], [0], [0], [1], [0, 0, 1, 1], [], []>} : vector<8x128xbf16>, vector<128x128xbf16>, vector<8x128xf32> -> vector<8x128xf32>
    %c0_3 = arith.constant 0 : index
    %c0_4 = arith.constant 0 : index
    %3 = vector.load %arg3[%c0_3, %c0_4] : memref<1x128xf32, #tpu.memory_space<vmem>>, vector<1x128xf32>
    %4 = vector.broadcast %3 : vector<1x128xf32> to vector<8x128xf32>
    %5 = arith.addf %2, %4 : vector<8x128xf32>
    %cst_5 = arith.constant 0.000000e+00 : f32
    %6 = vector.broadcast %cst_5 : f32 to vector<8x128xf32>
    %7 = arith.maximumf %5, %6 : vector<8x128xf32>
    %8 = arith.truncf %7 : vector<8x128xf32> to vector<8x128xbf16>
    %c0_6 = arith.constant 0 : index
    %c0_7 = arith.constant 0 : index
    %9 = vector.load %arg4[%c0_6, %c0_7] : memref<128x256xbf16, #tpu.memory_space<vmem>>, vector<128x256xbf16>
    %cst_8 = arith.constant dense<0.000000e+00> : vector<8x256xf32>
    %10 = tpu.matmul %8, %9, %cst_8 {dimension_numbers = #tpu.dot_dimension_numbers<[1], [0], [0], [1], [0, 0, 1, 1], [], []>} : vector<8x128xbf16>, vector<128x256xbf16>, vector<8x256xf32> -> vector<8x256xf32>
    %c0_9 = arith.constant 0 : index
    %c0_10 = arith.constant 0 : index
    %11 = vector.load %arg5[%c0_9, %c0_10] : memref<1x256xf32, #tpu.memory_space<vmem>>, vector<1x256xf32>
    %12 = vector.broadcast %11 : vector<1x256xf32> to vector<8x256xf32>
    %13 = arith.addf %10, %12 : vector<8x256xf32>
    %c0_11 = arith.constant 0 : index
    %c0_12 = arith.constant 0 : index
    %14 = vector.load %arg6[%c0_11, %c0_12] : memref<8x256xf32, #tpu.memory_space<vmem>>, vector<8x256xf32>
    tpu.vector_store %arg6[%c0_11, %c0_12], %13 {strides = array<i32>} : memref<8x256xf32, #tpu.memory_space<vmem>>, vector<8x256xf32>,
    return
  }
  func.func @transform_0(%arg0: i32) -> (i32, i32) {
    %c0_i32 = arith.constant 0 : i32
    %c0_i32_0 = arith.constant 0 : i32
    return %arg0, %c0_i32 : i32, i32
  }
  func.func @transform_1(%arg0: i32) -> (i32, i32) {
    %c0_i32 = arith.constant 0 : i32
    %c0_i32_0 = arith.constant 0 : i32
    %c0_i32_1 = arith.constant 0 : i32
    return %c0_i32, %c0_i32_0 : i32, i32
  }
  func.func @transform_2(%arg0: i32) -> (i32, i32) {
    %c0_i32 = arith.constant 0 : i32
    %c0_i32_0 = arith.constant 0 : i32
    %c0_i32_1 = arith.constant 0 : i32
    return %c0_i32, %c0_i32_0 : i32, i32
  }
  func.func @transform_3(%arg0: i32) -> (i32, i32) {
    %c0_i32 = arith.constant 0 : i32
    %c0_i32_0 = arith.constant 0 : i32
    %c0_i32_1 = arith.constant 0 : i32
    return %c0_i32, %c0_i32_0 : i32, i32
  }
  func.func @transform_4(%arg0: i32) -> (i32, i32) {
    %c0_i32 = arith.constant 0 : i32
    %c0_i32_0 = arith.constant 0 : i32
    %c0_i32_1 = arith.constant 0 : i32
    return %c0_i32, %c0_i32_0 : i32, i32
  }
  func.func @transform_5(%arg0: i32) -> (i32, i32) {
    %c0_i32 = arith.constant 0 : i32
    %c0_i32_0 = arith.constant 0 : i32
    return %arg0, %c0_i32 : i32, i32
  }
}

</mosaic_0001>

<llo_original>
// kernel: mlp_forward.1
$region0: #{mlp_forward.1}
  #allocation0 [shape = 'u32[]', space=smem, size = 0x4, offset = 0x4, fixed_abs, tag = 'smem constant byte address 0x4 - core index']
  #allocation1 [shape = 'u32[72,128]{1,0:T(1,128)}', space=vmem, size = 0x9000, scoped, tag = 'internal scratch']
  %s0 = inlined_call_operand.vmem [shape: bf16[8,128], index: 0, kind: input, shape index: {}]
  %s1 = inlined_call_operand.hbm [shape: bf16[128,128], index: 1, kind: input, shape index: {}]
  %s2 = inlined_call_operand.vmem [shape: f32[1,128], index: 2, kind: input, shape index: {}]
  %s3 = inlined_call_operand.hbm [shape: bf16[128,256], index: 3, kind: input, shape index: {}]
  %s4 = inlined_call_operand.vmem [shape: f32[1,256], index: 4, kind: input, shape index: {}]
  %s5 = inlined_call_operand.vmem [shape: f32[8,256], index: 5, kind: output, shape index: {}]
  %s6 = sld [smem:[#allocation0]]
  $region38: #{mlp_forward.1} parent=0
    _
  %s8 = ssub.s32 1, %s6
  %s9 = scalar_select 0, %s8, %s6
  $region1: #{mlp_forward.1} parent=0
    #allocation2 [shape = 'u8[32768]{0}', space=vmem, size = 0x8000, scoped, tag = 'input window, operand 1, single buffered']
    #allocation3 [shape = 's32[1]{0}', space=sflag, size = 0x4, scoped, tag = 'scoped memory for mlp_forward.1']
    #allocation4 [shape = 'u8[65536]{0}', space=vmem, size = 0x10000, scoped, tag = 'input window, operand 3, single buffered']
    #allocation5 [shape = 's32[1]{0}', space=sflag, size = 0x4, scoped, tag = 'scoped memory for mlp_forward.1']
    %10 = vsyncpa [#allocation3], 0
    %11 = vsyncpa [#allocation5], 0
    // Predicated region
    $region2: #{mlp_forward.1} parent=1 // pred_check
      _
    $region3: #{mlp_forward.1} parent=1 // pred_check_branch
      %13 = sbr.rel (0) target = $region5
    $region4: #{mlp_forward.1} parent=1 // pred_region
      _
    $region5: #{mlp_forward.1} parent=1 // pred_fallthru
      _
    // Predicated region
    $region6: #{mlp_forward.1} parent=1 // pred_check
      _
    $region7: #{mlp_forward.1} parent=1 // pred_check_branch
      %15 = sbr.rel (0) target = $region9
    $region8: #{mlp_forward.1} parent=1 // pred_region
      %17 = vsyncadd [#allocation3], 0
      %s18 = sshll.u32 %s1, 4
      %s19 = int_to_ptr.hbm [resolvable:$true] %s18
      %s20 = sshll.u32 [#allocation2], 4
      %s21 = int_to_ptr.vmem [resolvable:$true] %s20
      %26 = dma.hbm_to_vmem [thread:$0]  %s19, 1024, %s21, [#allocation3], 64, 64, 4
    $region9: #{mlp_forward.1} parent=1 // pred_fallthru
      _
    // Predicated region
    $region10: #{mlp_forward.1} parent=1 // pred_check
      _
    $region11: #{mlp_forward.1} parent=1 // pred_check_branch
      %28 = sbr.rel (0) target = $region13
    $region12: #{mlp_forward.1} parent=1 // pred_region
      _
    $region13: #{mlp_forward.1} parent=1 // pred_fallthru
      _
    // Predicated region
    $region14: #{mlp_forward.1} parent=1 // pred_check
      _
    $region15: #{mlp_forward.1} parent=1 // pred_check_branch
      %30 = sbr.rel (0) target = $region17
    $region16: #{mlp_forward.1} parent=1 // pred_region
      %32 = vsyncadd [#allocation5], 0
      %s33 = sshll.u32 %s3, 4
      %s34 = int_to_ptr.hbm [resolvable:$true] %s33
      %s35 = sshll.u32 [#allocation4], 4
      %s36 = int_to_ptr.vmem [resolvable:$true] %s35
      %41 = dma.hbm_to_vmem [thread:$0]  %s34, 2048, %s36, [#allocation5], 128, 128, 8
    $region17: #{mlp_forward.1} parent=1 // pred_fallthru
      _
    // Predicated region
    $region18: #{mlp_forward.1} parent=1 // pred_check
      _
    $region19: #{mlp_forward.1} parent=1 // pred_check_branch
      %43 = sbr.rel (0) target = $region21
    $region20: #{mlp_forward.1} parent=1 // pred_region
      _
    $region21: #{mlp_forward.1} parent=1 // pred_fallthru
      _
    // Predicated region
    $region22: #{mlp_forward.1} parent=1 // pred_check
      _
    $region23: #{mlp_forward.1} parent=1 // pred_check_branch
      %45 = sbr.rel (0) target = $region25
    $region24: #{mlp_forward.1} parent=1 // pred_region
      %47 = dma.done [#allocation3], 1024
    $region25: #{mlp_forward.1} parent=1 // pred_fallthru
      _
    // Predicated region
    $region26: #{mlp_forward.1} parent=1 // pred_check
      _
    $region27: #{mlp_forward.1} parent=1 // pred_check_branch
      %49 = sbr.rel (0) target = $region29
    $region28: #{mlp_forward.1} parent=1 // pred_region
      %51 = dma.done [#allocation5], 2048
    $region29: #{mlp_forward.1} parent=1 // pred_fallthru
      _
    %v52 = vld [vmem:[%s0] sm:$0xf]
    %v53 = vld [vmem:[#allocation2] sm:$0xf]
    %v54 = vld [vmem:[#allocation2 + $0x4] sm:$0xf]
    %v55 = vld [vmem:[#allocation2 + $0x8] sm:$0xf]
    %v56 = vld [vmem:[#allocation2 + $0xc] sm:$0xf]
    %v57 = vld [vmem:[#allocation2 + $0x10] sm:$0xf]
    %v58 = vld [vmem:[#allocation2 + $0x14] sm:$0xf]
    %v59 = vld [vmem:[#allocation2 + $0x18] sm:$0xf]
    %v60 = vld [vmem:[#allocation2 + $0x1c] sm:$0xf]
    %v61 = vld [vmem:[#allocation2 + $0x20] sm:$0xf]
    %v62 = vld [vmem:[#allocation2 + $0x24] sm:$0xf]
    %v63 = vld [vmem:[#allocation2 + $0x28] sm:$0xf]
    %v64 = vld [vmem:[#allocation2 + $0x2c] sm:$0xf]
    %v65 = vld [vmem:[#allocation2 + $0x30] sm:$0xf]
    %v66 = vld [vmem:[#allocation2 + $0x34] sm:$0xf]
    %v67 = vld [vmem:[#allocation2 + $0x38] sm:$0xf]
    %v68 = vld [vmem:[#allocation2 + $0x3c] sm:$0xf]
    %v69 = vld [vmem:[%s2] sm:$0x1]
    %v71 = vperm.slane %v69, 0
    %v89 = vunpack.c.l.b16 %v53
    %v90 = vunpack.c.l.b16 %v54
    %v91 = vunpack.c.l.b16 %v55
    %v92 = vunpack.c.l.b16 %v56
    %v93 = vunpack.c.l.b16 %v57
    %v94 = vunpack.c.l.b16 %v58
    %v95 = vunpack.c.l.b16 %v59
    %v96 = vunpack.c.l.b16 %v60
    %v97 = vunpack.c.l.b16 %v61
    %v98 = vunpack.c.l.b16 %v62
    %v99 = vunpack.c.l.b16 %v63
    %v100 = vunpack.c.l.b16 %v64
    %v101 = vunpack.c.l.b16 %v65
    %v102 = vunpack.c.l.b16 %v66
    %v103 = vunpack.c.l.b16 %v67
    %v104 = vunpack.c.l.b16 %v68
    %v105 = vpack.c.b16 %v90, %v89
    %v106 = vpack.c.b16 %v92, %v91
    %v107 = vpack.c.b16 %v94, %v93
    %v108 = vpack.c.b16 %v96, %v95
    %v109 = vpack.c.b16 %v98, %v97
    %v110 = vpack.c.b16 %v100, %v99
    %v111 = vpack.c.b16 %v102, %v101
    %v112 = vpack.c.b16 %v104, %v103
    %121 = vmatpush.bf16.msra.mxu0 %v112
    %122 = vmatpush.bf16.msra.mxu0 %v111
    %123 = vmatpush.bf16.msra.mxu0 %v110
    %124 = vmatpush.bf16.msra.mxu0 %v109
    %125 = vmatpush.bf16.msra.mxu0 %v108
    %126 = vmatpush.bf16.msra.mxu0 %v107
    %127 = vmatpush.bf16.msra.mxu0 %v106
    %128 = vmatpush.bf16.msra.mxu0 %v105
    %129 = vmatmul.bf16.gmra.mxu0 %v52
    %v130 = vpop.f32.mrf.mxu0
    %v131 = vadd.f32 %v71, %v130
    %v132 = vpop.f32.mrf.mxu0
    %133 = vdwg.mxu0
    %v134 = vmax.f32 %v131, 0.0
    %v135 = vpack.c.bf16 %v134, %v134
    %v136 = vld [vmem:[#allocation4] sm:$0xff]
    %v137 = vld [vmem:[#allocation4 + $0x8] sm:$0xff]
    %v138 = vld [vmem:[#allocation4 + $0x10] sm:$0xff]
    %v139 = vld [vmem:[#allocation4 + $0x18] sm:$0xff]
    %v140 = vld [vmem:[#allocation4 + $0x20] sm:$0xff]
    %v141 = vld [vmem:[#allocation4 + $0x28] sm:$0xff]
    %v142 = vld [vmem:[#allocation4 + $0x30] sm:$0xff]
    %v143 = vld [vmem:[#allocation4 + $0x38] sm:$0xff]
    %v144 = vld [vmem:[#allocation4 + $0x40] sm:$0xff]
    %v145 = vld [vmem:[#allocation4 + $0x48] sm:$0xff]
    %v146 = vld [vmem:[#allocation4 + $0x50] sm:$0xff]
    %v147 = vld [vmem:[#allocation4 + $0x58] sm:$0xff]
    %v148 = vld [vmem:[#allocation4 + $0x60] sm:$0xff]
    %v149 = vld [vmem:[#allocation4 + $0x68] sm:$0xff]
    %v150 = vld [vmem:[#allocation4 + $0x70] sm:$0xff]
    %v151 = vld [vmem:[#allocation4 + $0x78] sm:$0xff]
    %v152 = vld [vmem:[%s4] sm:$0x3]
    %v154 = vperm.slane %v152, 0
    %v155 = vperm.slane %v152, 1
    %v174 = vunpack.c.l.b16 %v136
    %v175 = vunpack.c.h.b16 %v136
    %v176 = vunpack.c.l.b16 %v137
    %v177 = vunpack.c.h.b16 %v137
    %v178 = vunpack.c.l.b16 %v138
    %v179 = vunpack.c.h.b16 %v138
    %v180 = vunpack.c.l.b16 %v139
    %v181 = vunpack.c.h.b16 %v139
    %v182 = vunpack.c.l.b16 %v140
    %v183 = vunpack.c.h.b16 %v140
    %v184 = vunpack.c.l.b16 %v141
    %v185 = vunpack.c.h.b16 %v141
    %v186 = vunpack.c.l.b16 %v142
    %v187 = vunpack.c.h.b16 %v142
    %v188 = vunpack.c.l.b16 %v143
    %v189 = vunpack.c.h.b16 %v143
    %v190 = vunpack.c.l.b16 %v144
    %v191 = vunpack.c.h.b16 %v144
    %v192 = vunpack.c.l.b16 %v145
    %v193 = vunpack.c.h.b16 %v145
    %v194 = vunpack.c.l.b16 %v146
    %v195 = vunpack.c.h.b16 %v146
    %v196 = vunpack.c.l.b16 %v147
    %v197 = vunpack.c.h.b16 %v147
    %v198 = vunpack.c.l.b16 %v148
    %v199 = vunpack.c.h.b16 %v148
    %v200 = vunpack.c.l.b16 %v149
    %v201 = vunpack.c.h.b16 %v149
    %v202 = vunpack.c.l.b16 %v150
    %v203 = vunpack.c.h.b16 %v150
    %v204 = vunpack.c.l.b16 %v151
    %v205 = vunpack.c.h.b16 %v151
    %v206 = vpack.c.b16 %v176, %v174
    %v207 = vpack.c.b16 %v177, %v175
    %v208 = vpack.c.b16 %v180, %v178
    %v209 = vpack.c.b16 %v181, %v179
    %v210 = vpack.c.b16 %v184, %v182
    %v211 = vpack.c.b16 %v185, %v183
    %v212 = vpack.c.b16 %v188, %v186
    %v213 = vpack.c.b16 %v189, %v187
    %v214 = vpack.c.b16 %v192, %v190
    %v215 = vpack.c.b16 %v193, %v191
    %v216 = vpack.c.b16 %v196, %v194
    %v217 = vpack.c.b16 %v197, %v195
    %v218 = vpack.c.b16 %v200, %v198
    %v219 = vpack.c.b16 %v201, %v199
    %v220 = vpack.c.b16 %v204, %v202
    %v221 = vpack.c.b16 %v205, %v203
    %238 = vmatpush.bf16.msra.mxu0 %v220
    %239 = vmatpush.bf16.msra.mxu0 %v218
    %240 = vmatpush.bf16.msra.mxu0 %v216
    %241 = vmatpush.bf16.msra.mxu0 %v214
    %242 = vmatpush.bf16.msra.mxu0 %v212
    %243 = vmatpush.bf16.msra.mxu0 %v210
    %244 = vmatpush.bf16.msra.mxu0 %v208
    %245 = vmatpush.bf16.msra.mxu0 %v206
    %246 = vmatmul.bf16.gmra.mxu0 %v135
    %v247 = vpop.f32.mrf.mxu0
    %v248 = vadd.f32 %v154, %v247
    %v249 = vpop.f32.mrf.mxu0
    %250 = vdwg.mxu0
    %251 = vmatpush.bf16.msra.mxu0 %v221
    %252 = vmatpush.bf16.msra.mxu0 %v219
    %253 = vmatpush.bf16.msra.mxu0 %v217
    %254 = vmatpush.bf16.msra.mxu0 %v215
    %255 = vmatpush.bf16.msra.mxu0 %v213
    %256 = vmatpush.bf16.msra.mxu0 %v211
    %257 = vmatpush.bf16.msra.mxu0 %v209
    %258 = vmatpush.bf16.msra.mxu0 %v207
    %259 = vmatmul.bf16.gmra.mxu0 %v135
    %v260 = vpop.f32.mrf.mxu0
    %v261 = vadd.f32 %v155, %v260
    %v262 = vpop.f32.mrf.mxu0
    %263 = vdwg.mxu0
    %264 = vst [vmem:[%s5] sm:$0xff] %v248
    %265 = vst [vmem:[%s5 + $0x8] sm:$0xff] %v261
    // Predicated region
    $region30: #{mlp_forward.1} parent=1 // pred_check
      _
    $region31: #{mlp_forward.1} parent=1 // pred_check_branch
      %267 = sbr.rel (0) target = $region33
    $region32: #{mlp_forward.1} parent=1 // pred_region
      _
    $region33: #{mlp_forward.1} parent=1 // pred_fallthru
      _
    // Predicated region
    $region34: #{mlp_forward.1} parent=1 // pred_check
      _
    $region35: #{mlp_forward.1} parent=1 // pred_check_branch
      %269 = sbr.rel (0) target = $region37
    $region36: #{mlp_forward.1} parent=1 // pred_region
      _
    $region37: #{mlp_forward.1} parent=1 // pred_fallthru
      _
    %270 = vsyncpa [#allocation3], 1
    %271 = vsyncpa [#allocation5], 1

</llo_original>
